<compile_context>
chip_gen: v7x
topology: tpu7x:2x2x1
jax: 0.10.0
libtpu: 0.0.40
codegen_flags: <defaults>
</compile_context>

<pallas_src>
import math
from functools import partial

import jax
import jax.numpy as jnp
from jax.experimental import pallas as pl
from jax.experimental.pallas import tpu as pltpu

_EPS = 1e-5


# --------------------------------------------------------------------------
# Pass 1: streaming per-channel partial sums / sums-of-squares
# --------------------------------------------------------------------------
def _stats_kernel(x_ref, out_ref, sum_ref, ssq_ref, *,
                  s_total, s_tile, tiles_per_chunk, ragged, per_lane):
    t = pl.program_id(2)

    @pl.when(t == 0)
    def _():
        sum_ref[...] = jnp.zeros_like(sum_ref)
        ssq_ref[...] = jnp.zeros_like(ssq_ref)

    xb = x_ref[0].astype(jnp.float32)                         # (C, s_tile)
    if ragged:
        # cdiv grid: mask the tail of the last (possibly padded) tile.
        off = (pl.program_id(1) * tiles_per_chunk + t) * s_tile
        col = jax.lax.broadcasted_iota(jnp.int32, xb.shape, 1)
        xb = jnp.where(col + off < s_total, xb, 0.0)

    if per_lane:
        # 128 per-lane partial accumulators: pure VPU adds in the steady
        # loop (no XLU cross-lane reductions, no masked (C,1) stores).
        s_acc = sum_ref[...]
        q_acc = ssq_ref[...]
        for k in range(s_tile // 128):
            blk = xb[:, k * 128:(k + 1) * 128]
            s_acc = s_acc + blk
            q_acc = q_acc + blk * blk
        sum_ref[...] = s_acc
        ssq_ref[...] = q_acc
    else:
        # single (non-128-multiple) tile: one direct lane reduction
        sum_ref[...] += jnp.sum(xb, axis=1, keepdims=True)
        ssq_ref[...] += jnp.sum(xb * xb, axis=1, keepdims=True)

    @pl.when(t == pl.num_programs(2) - 1)
    def _():
        s_col = jnp.sum(sum_ref[...], axis=1, keepdims=True)  # (C, 1)
        q_col = jnp.sum(ssq_ref[...], axis=1, keepdims=True)  # (C, 1)
        out_ref[0, 0] = jnp.concatenate([s_col, q_col], axis=1)  # (C, 2)


# --------------------------------------------------------------------------
# Pass 2: fully parallel tiled apply with fused, accumulative epilogue
# --------------------------------------------------------------------------
def _apply_kernel(x_ref, y_ref, stats_ref, b1_ref, w2_ref, b2_ref, o_ref,
                  *, cm, use_mxu):
    x = x_ref[0].astype(jnp.float32)           # (C, s_tile)
    yv = y_ref[0].astype(jnp.float32)          # (1, s_tile)
    st = stats_ref[0]                          # (C, 4)
    mean_c = st[:, 0:1]
    rstd_c = st[:, 1:2]
    means_n = st[:, 2:3]
    a = st[0:3 * cm, 3:4]                      # (3*Cm, 1)

    # first 1x1x1 conv of all three MLPs (rank-1 rewrite) + ReLU
    t = jnp.maximum(a * yv + b1_ref[...], 0.0)             # (3*Cm, s_tile)

    def head(mi):
        w = w2_ref[mi]                                      # (C, Cm)
        lo = mi * cm
        if use_mxu:
            # bf16 operands: f32 MXU is multi-pass on v6e/v7x; accumulate f32
            out = jnp.dot(w.astype(jnp.bfloat16),
                          t[lo:lo + cm, :].astype(jnp.bfloat16),
                          preferred_element_type=jnp.float32)
        else:
            # tiny contraction dim: VPU broadcast-FMAs beat a padded MXU pass
            out = w[:, 0:1] * t[lo:lo + 1, :]
            for k in range(1, cm):
                out = out + w[:, k:k + 1] * t[lo + k:lo + k + 1, :]
        return out + b2_ref[:, mi:mi + 1]

    # accumulative epilogue keeps at most ~3 (C, s_tile) intermediates live
    h = (x - mean_c) * rstd_c                  # instance norm
    h = h + means_n * head(1)                  # + means_n * alpha
    h = h * head(0)                            # * gamma
    o_ref[0] = (h + head(2)).astype(o_ref.dtype)   # + beta


# --------------------------------------------------------------------------
# Sizing helpers (C- and generation-aware)
# --------------------------------------------------------------------------
def _vmem_cap():
    """Generation-aware scoped-VMEM ceiling (v7x: 64 MiB/TC, v5e/v6e: 128 MiB)."""
    try:
        phys = int(pltpu.get_tpu_info().vmem_capacity_bytes)
    except Exception:
        phys = 64 << 20                         # conservative default
    return (40 << 20) if phys <= (80 << 20) else (96 << 20)


def _pick_s_tile(S, C, vmem_cap):
    """Spatial tile sized so C*s_tile*4 ≈ 1 MiB and the pass-2 working set
    (~10 live C×s_tile f32 arrays incl. double-buffered I/O) stays well under
    the per-generation VMEM cap.  Always a multiple of 256 unless one tile
    covers the whole spatial axis."""
    target = 1 << 20
    by_target = target // (4 * C)
    by_vmem = (vmem_cap // 2) // (10 * 4 * C)
    t = min(by_target, by_vmem, 16384)
    t = max((t // 256) * 256, 256)
    if t >= S:
        return S
    return t


def _vmem_limit(working_bytes, cap):
    return int(min(max(working_bytes + (8 << 20), 16 << 20), cap))


# --------------------------------------------------------------------------
# Wrapper
# --------------------------------------------------------------------------
def conditional_instance_norm_3d_plus(x, y, params):
    N, C, D, H, W = x.shape
    assert C >= 4, "num_features must be >= 4 (middle_feature = C // 4 >= 1)"
    assert y.shape == (N, 1, D, H, W)
    S = D * H * W
    cm = C // 4

    x2 = x.reshape(N, C, S)
    y2 = y.reshape(N, 1, S)

    # Pack the 12 weight/bias tensors into 4 dense operands.
    w1s = jnp.concatenate(
        [params["gamma_w1"], params["alpha_w1"], params["beta_w1"]],
        axis=0).astype(jnp.float32)                                    # (3Cm,C)
    b1s = jnp.concatenate(
        [params["gamma_b1"], params["alpha_b1"], params["beta_b1"]],
        axis=0).astype(jnp.float32)                                    # (3Cm,1)
    w2s = jnp.stack(
        [params["gamma_w2"], params["alpha_w2"], params["beta_w2"]],
        axis=0).astype(jnp.float32)                                    # (3,C,Cm)
    b2s = jnp.concatenate(
        [params["gamma_b2"], params["alpha_b2"], params["beta_b2"]],
        axis=1).astype(jnp.float32)                                    # (C, 3)

    cap = _vmem_cap()
    s_tile = _pick_s_tile(S, C, cap)
    n_st = pl.cdiv(S, s_tile)
    ragged = (n_st * s_tile != S)
    per_lane = (s_tile % 128 == 0)
    lane_w = 128 if per_lane else 1
    blk = C * s_tile * 4

    # Split S into P parallel super-chunks when the batch can't feed both
    # v7x TensorCores (neutral on single-TC v5e/v6e).
    P = 2 if (N == 1 and n_st >= 2 and n_st % 2 == 0) else 1
    T = n_st // P

    # ---- pass 1: per-(n, p) streaming partial stats ----
    partial_stats = pl.pallas_call(
        partial(_stats_kernel, s_total=S, s_tile=s_tile, tiles_per_chunk=T,
                ragged=ragged, per_lane=per_lane),
        out_shape=jax.ShapeDtypeStruct((N, P, C, 2), jnp.float32),
        grid_spec=pltpu.PrefetchScalarGridSpec(
            num_scalar_prefetch=0,
            grid=(N, P, T),
            in_specs=[
                pl.BlockSpec((1, C, s_tile), lambda n, p, t: (n, 0, p * T + t)),
            ],
            out_specs=pl.BlockSpec((1, 1, C, 2), lambda n, p, t: (n, p, 0, 0)),
            scratch_shapes=[pltpu.VMEM((C, lane_w), jnp.float32),
                            pltpu.VMEM((C, lane_w), jnp.float32)],
        ),
        compiler_params=pltpu.CompilerParams(
            dimension_semantics=("parallel", "parallel", "arbitrary"),
            vmem_limit_bytes=_vmem_limit(4 * blk + 2 * C * lane_w * 4, cap),
        ),
    )(x2)

    # ---- tiny per-sample finalize in plain JAX ----
    sums = partial_stats[:, :, :, 0].sum(axis=1)                     # (N, C)
    ssqs = partial_stats[:, :, :, 1].sum(axis=1)                     # (N, C)
    inv_s = 1.0 / float(S)
    mean = sums * inv_s
    var = jnp.maximum(ssqs * inv_s - mean * mean, 0.0)               # biased
    rstd = jax.lax.rsqrt(var + _EPS)
    mbar = jnp.mean(mean, axis=1, keepdims=True)
    dmean = mean - mbar
    v = jnp.sum(dmean * dmean, axis=1, keepdims=True) / max(C - 1, 1)
    means_n = dmean * jax.lax.rsqrt(v + _EPS)
    a = means_n @ w1s.T                                              # (N, 3Cm)
    a_pad = jnp.pad(a, ((0, 0), (0, C - 3 * cm)))                    # (N, C)
    stats = jnp.stack([mean, rstd, means_n, a_pad], axis=-1)         # (N, C, 4)
    stats = stats.astype(jnp.float32)

    # ---- pass 2: fully parallel tiled apply ----
    use_mxu = cm >= 8
    out = pl.pallas_call(
        partial(_apply_kernel, cm=cm, use_mxu=use_mxu),
        out_shape=jax.ShapeDtypeStruct((N, C, S), x.dtype),
        grid_spec=pltpu.PrefetchScalarGridSpec(
            num_scalar_prefetch=0,
            grid=(N, n_st),
            in_specs=[
                pl.BlockSpec((1, C, s_tile), lambda n, s: (n, 0, s)),
                pl.BlockSpec((1, 1, s_tile), lambda n, s: (n, 0, s)),
                pl.BlockSpec((1, C, 4), lambda n, s: (n, 0, 0)),
                pl.BlockSpec((3 * cm, 1), lambda n, s: (0, 0)),
                pl.BlockSpec((3, C, cm), lambda n, s: (0, 0, 0)),
                pl.BlockSpec((C, 3), lambda n, s: (0, 0)),
            ],
            out_specs=pl.BlockSpec((1, C, s_tile), lambda n, s: (n, 0, s)),
        ),
        compiler_params=pltpu.CompilerParams(
            dimension_semantics=("parallel", "parallel"),
            vmem_limit_bytes=_vmem_limit(
                10 * blk + 2 * s_tile * 4
                + (3 * cm + 3 * C * cm + 4 * C + 3 * C) * 4, cap),
        ),
    )(x2, y2, stats, b1s, w2s, b2s)
    return out.reshape(N, C, D, H, W)


# --------------------------------------------------------------------------
# Init + pure-JAX reference + test
# --------------------------------------------------------------------------
def init_params(key, C):
    """Deterministic init matching the module's __init__ shapes/statistics."""
    Cm = C // 4
    keys = jax.random.split(key, 12)
    params = {}
    idx = 0
    # gamma_conv / alpha_conv weights ~ N(1/C, 0.02); beta_conv ~ N(0, 0.02)
    for name, wmean in (("gamma", 1.0 / C), ("alpha", 1.0 / C), ("beta", 0.0)):
        params[f"{name}_w1"] = wmean + 0.02 * jax.random.normal(
            keys[idx], (Cm, C), jnp.float32); idx += 1
        b1_bound = 1.0 / math.sqrt(C)
        params[f"{name}_b1"] = jax.random.uniform(
            keys[idx], (Cm, 1), jnp.float32, -b1_bound, b1_bound); idx += 1
        params[f"{name}_w2"] = wmean + 0.02 * jax.random.normal(
            keys[idx], (C, Cm), jnp.float32); idx += 1
        b2_bound = 1.0 / math.sqrt(Cm)
        params[f"{name}_b2"] = jax.random.uniform(
            keys[idx], (C, 1), jnp.float32, -b2_bound, b2_bound); idx += 1
    return params


def reference(x, y, params):
    """Pure-JAX reference mirroring the PyTorch forward."""
    N, C, D, H, W = x.shape
    yr = jnp.broadcast_to(y, (N, C, D, H, W))
    means = jnp.mean(x, axis=(2, 3, 4))                       # (N, C)
    m = jnp.mean(means, axis=-1, keepdims=True)
    v = jnp.var(means, axis=-1, keepdims=True, ddof=1)        # torch.var unbiased
    means = (means - m) / jnp.sqrt(v + 1e-5)
    mu = jnp.mean(x, axis=(2, 3, 4), keepdims=True)
    var = jnp.var(x, axis=(2, 3, 4), keepdims=True)           # biased
    h = (x - mu) / jnp.sqrt(var + 1e-5)
    means_e = means[:, :, None, None, None]
    yv = yr * means_e

    def conv_mlp(w1, b1, w2, b2, z):
        t = jnp.einsum('oc,ncdhw->nodhw', w1, z) + b1[:, 0][None, :, None, None, None]
        t = jnp.maximum(t, 0.0)
        return jnp.einsum('oc,ncdhw->nodhw', w2, t) + b2[:, 0][None, :, None, None, None]

    gamma = conv_mlp(params["gamma_w1"], params["gamma_b1"],
                     params["gamma_w2"], params["gamma_b2"], yv)
    alpha = conv_mlp(params["alpha_w1"], params["alpha_b1"],
                     params["alpha_w2"], params["alpha_b2"], yv)
    beta = conv_mlp(params["beta_w1"], params["beta_b1"],
                    params["beta_w2"], params["beta_b2"], yv)
    h = h + means_e * alpha
    return gamma * h + beta


if __name__ == "__main__":
    key = jax.random.PRNGKey(0)
    kx, ky, kp = jax.random.split(key, 3)
    N, C, D, H, W = 2, 8, 8, 8, 8        # num_features=8 -> middle_feature=2
    x = jax.random.normal(kx, (N, C, D, H, W), jnp.float32)
    y = jax.random.normal(ky, (N, 1, D, H, W), jnp.float32)
    params = init_params(kp, C)

    out = conditional_instance_norm_3d_plus(x, y, params)
    out = jax.block_until_ready(out)

    ref = reference(x, y, params)
    max_err = float(jnp.max(jnp.abs(out - ref)))
    assert jnp.allclose(out, ref, rtol=1e-3, atol=1e-3), max_err
    print("KERNEL_OK")
</pallas_src>

<mosaic_0001>
module attributes {stable_mosaic.version = 11 : i64} {
  func.func @_stats_kernel(%arg0: i32, %arg1: i32, %arg2: i32, %arg3: memref<1x8x512xf32, #tpu.memory_space<vmem>>, %arg4: memref<1x1x8x2xf32, #tpu.memory_space<vmem>>, %arg5: memref<8x128xf32, #tpu.memory_space<vmem>>, %arg6: memref<8x128xf32, #tpu.memory_space<vmem>>) attributes {dimension_semantics = [#tpu.dimension_semantics<parallel>, #tpu.dimension_semantics<parallel>, #tpu.dimension_semantics<arbitrary>], iteration_bounds = array<i64: 2, 1, 1>, scalar_prefetch = 0 : i64, scratch_operands = 2 : i64, tpu.core_type = #tpu.core_type<tc>, window_params = [{transform_indices = @transform_0, window_bounds = array<i64: 1, 8, 512>}, {transform_indices = @transform_1, window_bounds = array<i64: 1, 1, 8, 2>}]} {
    %c0_i32 = arith.constant 0 : i32
    %0 = arith.cmpi eq, %arg2, %c0_i32 : i32
    %1 = arith.extui %0 : i1 to i32
    %c0_i32_0 = arith.constant 0 : i32
    %2 = arith.cmpi ne, %1, %c0_i32_0 : i32
    scf.if %2 {
      %cst = arith.constant 0.000000e+00 : f32
      %28 = vector.broadcast %cst : f32 to vector<8x128xf32>
      %c0_13 = arith.constant 0 : index
      %c0_14 = arith.constant 0 : index
      %29 = vector.load %arg5[%c0_13, %c0_14] : memref<8x128xf32, #tpu.memory_space<vmem>>, vector<8x128xf32>
      tpu.vector_store %arg5[%c0_13, %c0_14], %28 {strides = array<i32>} : memref<8x128xf32, #tpu.memory_space<vmem>>, vector<8x128xf32>,
      %cst_15 = arith.constant 0.000000e+00 : f32
      %30 = vector.broadcast %cst_15 : f32 to vector<8x128xf32>
      %c0_16 = arith.constant 0 : index
      %c0_17 = arith.constant 0 : index
      %31 = vector.load %arg6[%c0_16, %c0_17] : memref<8x128xf32, #tpu.memory_space<vmem>>, vector<8x128xf32>
      tpu.vector_store %arg6[%c0_16, %c0_17], %30 {strides = array<i32>} : memref<8x128xf32, #tpu.memory_space<vmem>>, vector<8x128xf32>,
    } else {
    }
    %c0 = arith.constant 0 : index
    %c0_1 = arith.constant 0 : index
    %c0_2 = arith.constant 0 : index
    %3 = vector.load %arg3[%c0, %c0_1, %c0_2] : memref<1x8x512xf32, #tpu.memory_space<vmem>>, vector<1x8x512xf32>
    %4 = vector.shape_cast %3 : vector<1x8x512xf32> to vector<8x512xf32>
    %c0_3 = arith.constant 0 : index
    %c0_4 = arith.constant 0 : index
    %5 = vector.load %arg5[%c0_3, %c0_4] : memref<8x128xf32, #tpu.memory_space<vmem>>, vector<8x128xf32>
    %c0_5 = arith.constant 0 : index
    %c0_6 = arith.constant 0 : index
    %6 = vector.load %arg6[%c0_5, %c0_6] : memref<8x128xf32, #tpu.memory_space<vmem>>, vector<8x128xf32>
    %7 = vector.extract_strided_slice %4 {offsets = [0, 0], sizes = [8, 128], strides = [1, 1]} : vector<8x512xf32> to vector<8x128xf32>
    %8 = arith.addf %5, %7 : vector<8x128xf32>
    %9 = arith.mulf %7, %7 : vector<8x128xf32>
    %10 = arith.addf %6, %9 : vector<8x128xf32>
    %11 = vector.extract_strided_slice %4 {offsets = [0, 128], sizes = [8, 128], strides = [1, 1]} : vector<8x512xf32> to vector<8x128xf32>
    %12 = arith.addf %8, %11 : vector<8x128xf32>
    %13 = arith.mulf %11, %11 : vector<8x128xf32>
    %14 = arith.addf %10, %13 : vector<8x128xf32>
    %15 = vector.extract_strided_slice %4 {offsets = [0, 256], sizes = [8, 128], strides = [1, 1]} : vector<8x512xf32> to vector<8x128xf32>
    %16 = arith.addf %12, %15 : vector<8x128xf32>
    %17 = arith.mulf %15, %15 : vector<8x128xf32>
    %18 = arith.addf %14, %17 : vector<8x128xf32>
    %19 = vector.extract_strided_slice %4 {offsets = [0, 384], sizes = [8, 128], strides = [1, 1]} : vector<8x512xf32> to vector<8x128xf32>
    %20 = arith.addf %16, %19 : vector<8x128xf32>
    %21 = arith.mulf %19, %19 : vector<8x128xf32>
    %22 = arith.addf %18, %21 : vector<8x128xf32>
    %c0_7 = arith.constant 0 : index
    %c0_8 = arith.constant 0 : index
    %23 = vector.load %arg5[%c0_7, %c0_8] : memref<8x128xf32, #tpu.memory_space<vmem>>, vector<8x128xf32>
    tpu.vector_store %arg5[%c0_7, %c0_8], %20 {strides = array<i32>} : memref<8x128xf32, #tpu.memory_space<vmem>>, vector<8x128xf32>,
    %c0_9 = arith.constant 0 : index
    %c0_10 = arith.constant 0 : index
    %24 = vector.load %arg6[%c0_9, %c0_10] : memref<8x128xf32, #tpu.memory_space<vmem>>, vector<8x128xf32>
    tpu.vector_store %arg6[%c0_9, %c0_10], %22 {strides = array<i32>} : memref<8x128xf32, #tpu.memory_space<vmem>>, vector<8x128xf32>,
    %c0_i32_11 = arith.constant 0 : i32
    %25 = arith.cmpi eq, %arg2, %c0_i32_11 : i32
    %26 = arith.extui %25 : i1 to i32
    %c0_i32_12 = arith.constant 0 : i32
    %27 = arith.cmpi ne, %26, %c0_i32_12 : i32
    scf.if %27 {
      %c0_13 = arith.constant 0 : index
      %c0_14 = arith.constant 0 : index
      %28 = vector.load %arg5[%c0_13, %c0_14] : memref<8x128xf32, #tpu.memory_space<vmem>>, vector<8x128xf32>
      %cst = arith.constant dense<0.000000e+00> : vector<8xf32>
      %29 = vector.multi_reduction <add>, %28, %cst [1] : vector<8x128xf32> to vector<8xf32>
      %30 = vector.shape_cast %29 : vector<8xf32> to vector<8x1xf32>
      %c0_15 = arith.constant 0 : index
      %c0_16 = arith.constant 0 : index
      %31 = vector.load %arg6[%c0_15, %c0_16] : memref<8x128xf32, #tpu.memory_space<vmem>>, vector<8x128xf32>
      %cst_17 = arith.constant dense<0.000000e+00> : vector<8xf32>
      %32 = vector.multi_reduction <add>, %31, %cst_17 [1] : vector<8x128xf32> to vector<8xf32>
      %33 = vector.shape_cast %32 : vector<8xf32> to vector<8x1xf32>
      %34 = tpu.concatenate %30, %33 in 1 : vector<8x1xf32>, vector<8x1xf32> -> vector<8x2xf32>
      %c0_18 = arith.constant 0 : index
      %c0_19 = arith.constant 0 : index
      %c0_20 = arith.constant 0 : index
      %c0_21 = arith.constant 0 : index
      %35 = vector.load %arg4[%c0_18, %c0_19, %c0_20, %c0_21] : memref<1x1x8x2xf32, #tpu.memory_space<vmem>>, vector<1x1x8x2xf32>
      %36 = vector.shape_cast %35 : vector<1x1x8x2xf32> to vector<8x2xf32>
      %37 = vector.shape_cast %34 : vector<8x2xf32> to vector<1x1x8x2xf32>
      tpu.vector_store %arg4[%c0_18, %c0_19, %c0_20, %c0_21], %37 {strides = array<i32>} : memref<1x1x8x2xf32, #tpu.memory_space<vmem>>, vector<1x1x8x2xf32>,
    } else {
    }
    return
  }
  func.func @transform_0(%arg0: i32, %arg1: i32, %arg2: i32) -> (i32, i32, i32) {
    %c1_i32 = arith.constant 1 : i32
    %0 = arith.muli %arg1, %c1_i32 : i32
    %1 = arith.addi %0, %arg2 : i32
    %c0_i32 = arith.constant 0 : i32
    %c0_i32_0 = arith.constant 0 : i32
    return %arg0, %c0_i32, %1 : i32, i32, i32
  }
  func.func @transform_1(%arg0: i32, %arg1: i32, %arg2: i32) -> (i32, i32, i32, i32) {
    %c0_i32 = arith.constant 0 : i32
    %c0_i32_0 = arith.constant 0 : i32
    %c0_i32_1 = arith.constant 0 : i32
    return %arg0, %arg1, %c0_i32, %c0_i32_0 : i32, i32, i32, i32
  }
}

</mosaic_0001>

<llo_original>
// kernel: tpu_custom_call.1
$region0: #{tpu_custom_call.1}
  #allocation0 [shape = 'u32[]', space=smem, size = 0x4, offset = 0x4, fixed_abs, tag = 'smem constant byte address 0x4 - core index']
  #allocation1 [shape = 'u32[144,128]{1,0:T(1,128)}', space=vmem, size = 0x12000, scoped, tag = 'internal scratch']
  #allocation2 [shape = 'f32[8,128]{1,0:T(8,128)}', space=vmem, size = 0x1000, scoped, tag = 'scratch operand']
  #allocation3 [shape = 'f32[8,128]{1,0:T(8,128)}', space=vmem, size = 0x1000, scoped, tag = 'scratch operand']
  %s0 = inlined_call_operand.hbm [shape: f32[2,8,512], index: 0, kind: input, shape index: {}]
  %s1 = inlined_call_operand.vmem [shape: f32[2,1,8,2], index: 1, kind: output, shape index: {}]
  %s2 = sld [smem:[#allocation0]]
  $region49: #{tpu_custom_call.1} parent=0
    _
  %s4 = ssub.s32 1, %s2
  %s5 = scalar_select 0, %s4, %s2
  $region1: #{tpu_custom_call.1} parent=0
    #allocation4 [shape = 'u8[32768]{0}', space=vmem, size = 0x8000, scoped, tag = 'input window, operand 0']
    #allocation5 [shape = 's32[2]{0}', space=sflag, size = 0x8, scoped, tag = 'scoped memory for tpu_custom_call.1']
    %6 = vsyncpa [#allocation5], 0
    %s7 = scalar_lea.sflag [#allocation5], 1
    %8 = vsyncpa %s7, 0
    loop: start=0, step=1, limit=4
    $region2: #{tpu_custom_call.1} parent=1 // loop_pre_header
      _
    $region3: #{tpu_custom_call.1} parent=1 // loop_header
      %s10 = sphi 0, %s14
      %p11 = scmp.ge.s32.totalorder %s10, 4
      %s17 = sphi 0, %s36
      %s18 = sphi 0, %s32
      %s19 = sphi 0, %s28
      %s20 = sphi 0, %s17
      %s21 = sphi 0, %s18
      %s22 = sphi 0, %s19
      %s23 = sphi 0, %s20
      %s24 = sphi 0, %s21
      %s25 = sphi 0, %s22
      %s43 = sphi 0, %s45
      %s46 = sphi 0, %s43
      %s47 = sphi 0, %s46
      %s63 = sphi 0, %s47
      %s71 = sphi 0, %s73
      %s74 = sphi 0, %s71
      %s75 = sphi 0, %s74
      %s91 = sphi 0, %s75
    $region4: #{tpu_custom_call.1} parent=1 // loop_header_branch
      %13 = sbr.rel (%p11) target = $region8
    $region5: #{tpu_custom_call.1} parent=1 // loop_body
      %s15 = ssub.s32 %s10, 1
      %s16 = ssub.s32 %s10, 2
      %s26 = sadd.s32 1, %s19
      %p27 = scmp.ge.s32.totalorder %s26, 1
      %s28 = scalar_select %p27, 0, %s26
      %s29 = sadd.s32 1, %s18
      %s30 = scalar_select %p27, %s29, %s18
      %p31 = scmp.ge.s32.totalorder %s30, 1
      %s32 = scalar_select %p31, 0, %s30
      %s33 = sadd.s32 1, %s17
      %s34 = scalar_select %p31, %s33, %s17
      %p35 = scmp.ge.s32.totalorder %s34, 2
      %s36 = scalar_select %p35, 0, %s34
      %s37 = sadd.s32 %s18, %s19
      %s38 = sadd.s32 %s32, %s28
      %s39 = ssub.s32 %s17, %s36
      %s40 = ssub.s32 %s37, %s38
      %s41 = sor.u32 %s39, %s40
      %p42 = scmp.eq.s32.totalorder %s41, 0
      %s44 = sadd.s32 %s43, 1
      %s45 = scalar_select %p42, %s43, %s44
      %p48 = pneg %p42
      %p49 = scmp.eq.s32.totalorder %s10, 1
      %p50 = por %p48, %p49
      %p51 = scmp.ne.s32.totalorder %s43, %s46
      %p52 = scmp.eq.s32.totalorder %s10, 0
      %p53 = por %p51, %p52
      %p54 = scmp.ne.s32.totalorder %s43, %s46
      %p55 = scmp.eq.s32.totalorder %s15, 1
      %p56 = por %p54, %p55
      %p57 = scmp.ne.s32.totalorder %s46, %s47
      %p58 = scmp.eq.s32.totalorder %s15, 0
      %p59 = por %p57, %p58
      %p60 = scmp.ne.s32.totalorder %s46, %s47
      %p61 = scmp.eq.s32.totalorder %s16, 1
      %p62 = por %p60, %p61
      %p64 = scmp.ne.s32.totalorder %s47, %s63
      %p65 = scmp.eq.s32.totalorder %s16, 0
      %p66 = por %p64, %p65
      %s67 = ssub.s32 %s17, %s36
      %s68 = ssub.s32 %s18, %s32
      %s69 = sor.u32 %s67, %s68
      %p70 = scmp.eq.s32.totalorder %s69, 0
      %s72 = sadd.s32 %s71, 1
      %s73 = scalar_select %p70, %s71, %s72
      %p76 = pneg %p70
      %p77 = scmp.eq.s32.totalorder %s10, 1
      %p78 = por %p76, %p77
      %p79 = scmp.ne.s32.totalorder %s71, %s74
      %p80 = scmp.eq.s32.totalorder %s10, 0
      %p81 = por %p79, %p80
      %p82 = scmp.ne.s32.totalorder %s71, %s74
      %p83 = scmp.eq.s32.totalorder %s15, 1
      %p84 = por %p82, %p83
      %p85 = scmp.ne.s32.totalorder %s74, %s75
      %p86 = scmp.eq.s32.totalorder %s15, 0
      %p87 = por %p85, %p86
      %p88 = scmp.ne.s32.totalorder %s74, %s75
      %p89 = scmp.eq.s32.totalorder %s16, 1
      %p90 = por %p88, %p89
      %p92 = scmp.ne.s32.totalorder %s75, %s91
      %p93 = scmp.eq.s32.totalorder %s16, 0
      %p94 = por %p92, %p93
      %p95 = scmp.le.s32.totalorder 1, %s10
      %p96 = scmp.lt.s32.totalorder %s10, 3
      %p97 = pnand %p95, %p96
      %p98 = pneg %p97
      // Predicated region
      $region9: #{tpu_custom_call.1} parent=5 // pred_check
        _
      $region10: #{tpu_custom_call.1} parent=5 // pred_check_branch
        %100 = sbr.rel (%p97) target = $region12
      $region11: #{tpu_custom_call.1} parent=5 // pred_region
        %s101 = ssub.s32 %s10, 1
      $region12: #{tpu_custom_call.1} parent=5 // pred_fallthru
        _
      %p102 = scmp.lt.s32.totalorder %s10, 2
      // Predicated region
      $region13: #{tpu_custom_call.1} parent=5 // pred_check
        %p103 = pneg %p102
      $region14: #{tpu_custom_call.1} parent=5 // pred_check_branch
        %105 = sbr.rel (%p103) target = $region16
      $region15: #{tpu_custom_call.1} parent=5 // pred_region
        // Predicated region
        $region17: #{tpu_custom_call.1} parent=15 // pred_check
          %p106 = pneg %p53
        $region18: #{tpu_custom_call.1} parent=15 // pred_check_branch
          %108 = sbr.rel (%p106) target = $region20
        $region19: #{tpu_custom_call.1} parent=15 // pred_region
          %s109 = sand.u32 %s43, 1
          %s110 = scalar_lea.sflag [#allocation5], %s109
          %s111 = sand.u32 %s43, 1
          %s112 = smul.addr %s111, 32
          %s113 = scalar_lea.vmem [#allocation4], %s112
          %s114 = sadd.s32 %s18, %s19
          %s115 = smul.u32 4, %s114
          %s117 = ssub.s32 512, 512
          %118 = vsyncadd %s110, %s117
          %s119 = smul.addr %s17, 4
          %s120 = sadd.s32 %s115, %s119
          %s121 = smul.addr %s120, 128
          %s122 = scalar_lea.hbm %s0, %s121
          %s124 = sshll.u32 %s113, 4
          %s125 = int_to_ptr.vmem [resolvable:$true] %s124
          %127 = dma.hbm_to_vmem [thread:$0]  %s122, 512, %s125, %s110
        $region20: #{tpu_custom_call.1} parent=15 // pred_fallthru
          _
      $region16: #{tpu_custom_call.1} parent=5 // pred_fallthru
        _
      %p128 = scmp.le.s32.totalorder 1, %s10
      %p129 = scmp.lt.s32.totalorder %s10, 3
      %p130 = pnand %p128, %p129
      %p131 = pneg %p130
      // Predicated region
      $region21: #{tpu_custom_call.1} parent=5 // pred_check
        _
      $region22: #{tpu_custom_call.1} parent=5 // pred_check_branch
        %133 = sbr.rel (%p130) target = $region24
      $region23: #{tpu_custom_call.1} parent=5 // pred_region
        %s134 = ssub.s32 %s10, 1
        %s135 = sand.u32 %s46, 1
        %s136 = scalar_lea.sflag [#allocation5], %s135
        %s137 = sand.u32 %s46, 1
        %s138 = smul.addr %s137, 32
        %s139 = scalar_lea.vmem [#allocation4], %s138
        // Predicated region
        $region25: #{tpu_custom_call.1} parent=23 // pred_check
          %p140 = pneg %p59
        $region26: #{tpu_custom_call.1} parent=23 // pred_check_branch
          %142 = sbr.rel (%p140) target = $region28
        $region27: #{tpu_custom_call.1} parent=23 // pred_region
          %143 = dma.done %s136, 512
        $region28: #{tpu_custom_call.1} parent=23 // pred_fallthru
          _
        %s144 = sand.u32 %s46, 1
        %s145 = scalar_lea.sflag [#allocation5], %s144
        %s146 = sand.u32 %s46, 1
        %s147 = smul.addr %s146, 32
        %s148 = scalar_lea.vmem [#allocation4], %s147
        %p149 = pneg %p59
        %p150 = pneg %p56
        %p151 = pneg %p87
        %p152 = pneg %p84
        %p153 = scmp.lt.s32.totalorder %s20, 1
        %s154 = scalar_select %p153, %s20, 1
        %p155 = scmp.lt.s32.totalorder %s21, 0
        %s156 = scalar_select %p155, %s21, 0
        %s157 = sadd.s32 %s156, %s154
        %s158 = smul.addr %s157, 8
        %s159 = scalar_lea.vmem %s1, %s158
        %s160 = sadd.s32 %s21, %s22
        %s161 = smul.u32 4, %s160
        %p162 = scmp.lt.s32.totalorder %s20, 1
        %s163 = scalar_select %p162, %s20, 1
        %p164 = scmp.lt.s32.totalorder %s21, 0
        %s165 = scalar_select %p164, %s21, 0
        %s166 = sadd.s32 %s165, %s163
        %s167 = smul.addr %s166, 8
        %s168 = scalar_lea.vmem %s1, %s167
        %p169 = scmp.eq.s32.totalorder %s22, 0
        // Predicated region
        $region29: #{tpu_custom_call.1} parent=23 // pred_check
          %p170 = pneg %p169
        $region30: #{tpu_custom_call.1} parent=23 // pred_check_branch
          %172 = sbr.rel (%p170) target = $region32
        $region31: #{tpu_custom_call.1} parent=23 // pred_region
          %173 = vst [vmem:[#allocation2] sm:$0xff] 0.0
          %174 = vst [vmem:[#allocation3] sm:$0xff] 0.0
        $region32: #{tpu_custom_call.1} parent=23 // pred_fallthru
          _
        %v175 = vld [vmem:[%s139] sm:$0xff]
        %v176 = vld [vmem:[%s139 + $0x8] sm:$0xff]
        %v177 = vld [vmem:[%s139 + $0x10] sm:$0xff]
        %v178 = vld [vmem:[%s139 + $0x18] sm:$0xff]
        %v179 = vld [vmem:[#allocation2] sm:$0xff]
        %v180 = vld [vmem:[#allocation3] sm:$0xff]
        %v181 = vadd.f32 %v179, %v175
        %v182 = vmul.f32 %v175, %v175
        %v183 = vadd.f32 %v180, %v182
        %v184 = vadd.f32 %v181, %v176
        %v185 = vmul.f32 %v176, %v176
        %v186 = vadd.f32 %v183, %v185
        %v187 = vadd.f32 %v184, %v177
        %v188 = vmul.f32 %v177, %v177
        %v189 = vadd.f32 %v186, %v188
        %v190 = vadd.f32 %v187, %v178
        %v191 = vmul.f32 %v178, %v178
        %v192 = vadd.f32 %v189, %v191
        %193 = vst [vmem:[#allocation2] sm:$0xff] %v190
        %194 = vst [vmem:[#allocation3] sm:$0xff] %v192
        // Predicated region
        $region33: #{tpu_custom_call.1} parent=23 // pred_check
          %p195 = pneg %p169
        $region34: #{tpu_custom_call.1} parent=23 // pred_check_branch
          %197 = sbr.rel (%p195) target = $region36
        $region35: #{tpu_custom_call.1} parent=23 // pred_region
          %v198 = vld [vmem:[#allocation2] sm:$0xff]
          %199 = vadd.xlane.f32.xlu0 %v198
          %v200 = vpop.xlane.xlu0 %199
          %v201 = vld [vmem:[#allocation3] sm:$0xff]
          %202 = vadd.xlane.f32.xlu0 %v201
          %v203 = vpop.xlane.xlu0 %202
          %vm204 = vcmask 7168
          %v205 = vsel %vm204, %v200, %v203
          %vm206 = vcmask 15360
          %207 = vst.msk [vmem:[%s168] sm:$0xff] %vm206, %v205
        $region36: #{tpu_custom_call.1} parent=23 // pred_fallthru
          _
        %p208 = scmp.lt.s32.totalorder %s20, 1
        %s209 = scalar_select %p208, %s20, 1
        %p210 = scmp.lt.s32.totalorder %s21, 0
        %s211 = scalar_select %p210, %s21, 0
        %s212 = sadd.s32 %s211, %s209
        %s213 = smul.addr %s212, 8
        %s214 = scalar_lea.vmem %s1, %s213
        // Predicated region
        $region37: #{tpu_custom_call.1} parent=23 // pred_check
          %p215 = pneg %p84
        $region38: #{tpu_custom_call.1} parent=23 // pred_check_branch
          %217 = sbr.rel (%p215) target = $region40
        $region39: #{tpu_custom_call.1} parent=23 // pred_region
          _
        $region40: #{tpu_custom_call.1} parent=23 // pred_fallthru
          _
      $region24: #{tpu_custom_call.1} parent=5 // pred_fallthru
        _
      %p218 = scmp.le.s32.totalorder 2, %s10
      // Predicated region
      $region41: #{tpu_custom_call.1} parent=5 // pred_check
        %p219 = pneg %p218
      $region42: #{tpu_custom_call.1} parent=5 // pred_check_branch
        %221 = sbr.rel (%p219) target = $region44
      $region43: #{tpu_custom_call.1} parent=5 // pred_region
        %s222 = ssub.s32 %s10, 2
        // Predicated region
        $region45: #{tpu_custom_call.1} parent=43 // pred_check
          %p223 = pneg %p90
        $region46: #{tpu_custom_call.1} parent=43 // pred_check_branch
          %225 = sbr.rel (%p223) target = $region48
        $region47: #{tpu_custom_call.1} parent=43 // pred_region
          %p226 = scmp.lt.s32.totalorder %s23, 1
          %s227 = scalar_select %p226, %s23, 1
          %p228 = scmp.lt.s32.totalorder %s24, 0
          %s229 = scalar_select %p228, %s24, 0
          %s230 = sadd.s32 %s229, %s227
          %s231 = smul.addr %s230, 8
          %s232 = scalar_lea.vmem %s1, %s231
        $region48: #{tpu_custom_call.1} parent=43 // pred_fallthru
          _
      $region44: #{tpu_custom_call.1} parent=5 // pred_fallthru
        _
    $region6: #{tpu_custom_call.1} parent=1 // loop_footer
      %s14 = sadd.s32 1, %s10
    $region7: #{tpu_custom_call.1} parent=1 // loop_footer_branch
      %9 = sbr.rel target = $region3
    $region8: #{tpu_custom_call.1} parent=1 // loop_exit
      _
    %233 = vsyncpa [#allocation5], 1
    %s234 = scalar_lea.sflag [#allocation5], 1
    %235 = vsyncpa %s234, 1

</llo_original>
